<compile_context>
chip_gen: v7x
topology: tpu7x:2x2x1
jax: 0.10.0
libtpu: 0.0.40
codegen_flags: <defaults>
</compile_context>

<pallas_src>
import jax
import jax.numpy as jnp
from jax.experimental import pallas as pl
from jax.experimental.pallas import tpu as pltpu


def fnn_kernel(x_ref,
               w1_ref, b1_ref,
               w2_ref, b2_ref,
               w3_ref, b3_ref,
               w4_ref, b4_ref,
               o_ref):
    """Fused 4-layer MLP forward on one batch tile.

    x_ref:  [TB, 5]   f32 (cast to the MXU compute dtype in-kernel)
    wN_ref: [in, out] bf16 (resident in VMEM across all grid steps)
    bN_ref: [1, out]  f32
    o_ref:  [TB, 3]   f32 logits (narrow, lane-masked store, 12 B/row to HBM)
    """
    cdt = w1_ref.dtype  # MXU compute dtype (bf16)

    # Dense 1 + ReLU (bf16 matmul, f32 accumulate / f32 elementwise).
    h = jnp.dot(x_ref[...].astype(cdt), w1_ref[...],
                preferred_element_type=jnp.float32) + b1_ref[...]
    h = jnp.maximum(h, 0.0)
    # TODO(synk): nn.Dropout(p=0.2) is identity in eval/inference mode; training-time
    #             stochastic masking (pltpu.prng_random_bits) intentionally not applied.

    # Dense 2 + ReLU
    h = jnp.dot(h.astype(cdt), w2_ref[...],
                preferred_element_type=jnp.float32) + b2_ref[...]
    h = jnp.maximum(h, 0.0)

    # Dense 3 + ReLU
    h = jnp.dot(h.astype(cdt), w3_ref[...],
                preferred_element_type=jnp.float32) + b3_ref[...]
    h = jnp.maximum(h, 0.0)

    # Dense 4 (logits, no activation), stored narrow (3 real lanes).
    logits = jnp.dot(h.astype(cdt), w4_ref[...],
                     preferred_element_type=jnp.float32) + b4_ref[...]
    o_ref[...] = logits.astype(o_ref.dtype)


def _round_up(v, m):
    return (v + m - 1) // m * m


def fnn_forward(x, params, *, tile_b=4096, compute_dtype=jnp.bfloat16):
    """Calls the fused Pallas kernel over a batch grid.

    tile_b: max rows per grid step.  Narrow blocks pad to 128 lanes in VMEM,
            so per-buffer footprint ~= TB * 512 B for both x and out; at the
            default 4096 that is ~8 MiB double-buffered -- safe on every
            generation.  Sweepable (larger amortizes the ~0.35 us/step
            overhead; it only matters once >= 2 steps exist anyway).
    """
    (w1, b1), (w2, b2), (w3, b3), (w4, b4) = params
    B, F = x.shape
    C = w4.shape[1]

    # Weights/biases are tiny (<3K params): bf16 weights for the MXU, f32 biases.
    w1q, w2q, w3q, w4q = (w.astype(compute_dtype) for w in (w1, w2, w3, w4))
    b1f, b2f, b3f, b4f = (b.astype(jnp.float32) for b in (b1, b2, b3, b4))

    # Pad batch only to the f32 sublane granularity (8 rows), and only if needed.
    B8 = _round_up(B, 8)
    if B8 != B:
        x = jnp.pad(x, ((0, B8 - B), (0, 0)))

    # Balanced tiles instead of rounding B up to a whole tile; ensure >= 2 grid
    # steps when possible so the "parallel" batch axis can use both v7x TCs.
    n_steps = pl.cdiv(B8, tile_b)
    if B8 >= 16:
        n_steps = max(n_steps, 2)
    TB = _round_up(pl.cdiv(B8, n_steps), 8)
    grid = (pl.cdiv(B8, TB),)

    const = lambda i: (0, 0)  # weights/biases: same block every step -> resident

    flops = 2 * B8 * (F * 64 + 64 * 32 + 32 * 16 + 16 * C)
    bytes_accessed = (
        B8 * F * 4                      # x in (f32)
        + B8 * C * 4                    # logits out (f32)
        + sum(int(a.size) * a.dtype.itemsize
              for a in (w1q, b1f, w2q, b2f, w3q, b3f, w4q, b4f))
    )

    out = pl.pallas_call(
        fnn_kernel,
        out_shape=jax.ShapeDtypeStruct((B8, C), jnp.float32),
        grid=grid,
        in_specs=[
            pl.BlockSpec((TB, F), lambda i: (i, 0)),          # x: tiled over batch
            pl.BlockSpec(w1q.shape, const), pl.BlockSpec(b1f.shape, const),
            pl.BlockSpec(w2q.shape, const), pl.BlockSpec(b2f.shape, const),
            pl.BlockSpec(w3q.shape, const), pl.BlockSpec(b3f.shape, const),
            pl.BlockSpec(w4q.shape, const), pl.BlockSpec(b4f.shape, const),
        ],
        out_specs=pl.BlockSpec((TB, C), lambda i: (i, 0)),    # narrow logits
        compiler_params=pltpu.CompilerParams(
            dimension_semantics=("parallel",),                # megacore on v7x
        ),
        cost_estimate=pl.CostEstimate(flops=flops, transcendentals=0,
                                      bytes_accessed=bytes_accessed),
    )(x, w1q, b1f, w2q, b2f, w3q, b3f, w4q, b4f)

    return out[:B] if B8 != B else out


def init_params(key, num_features=5, num_classes=3):
    """PyTorch-Linear-style init: U(-1/sqrt(fan_in), 1/sqrt(fan_in)).
    Weights stored as [in, out]; biases as [1, out] for lane-friendly broadcast."""
    dims = [(num_features, 64), (64, 32), (32, 16), (16, num_classes)]
    params = []
    for (fan_in, fan_out) in dims:
        key, kw, kb = jax.random.split(key, 3)
        bound = 1.0 / jnp.sqrt(float(fan_in))
        w = jax.random.uniform(kw, (fan_in, fan_out), jnp.float32, -bound, bound)
        b = jax.random.uniform(kb, (1, fan_out), jnp.float32, -bound, bound)
        params.append((w, b))
    return params


def reference_forward(x, params, compute_dtype=jnp.bfloat16):
    """Pure-JAX reference with the same bf16-input / f32-accumulate recipe
    (dropout in eval mode)."""
    (w1, b1), (w2, b2), (w3, b3), (w4, b4) = params

    def dense(h, w, b):
        return jnp.dot(h.astype(compute_dtype), w.astype(compute_dtype),
                       preferred_element_type=jnp.float32) + b.astype(jnp.float32)

    h = jnp.maximum(dense(x, w1, b1), 0.0)
    h = jnp.maximum(dense(h, w2, b2), 0.0)
    h = jnp.maximum(dense(h, w3, b3), 0.0)
    return dense(h, w4, b4)


if __name__ == "__main__":
    key = jax.random.PRNGKey(0)
    key, kx = jax.random.split(key)

    batch = 203          # not a multiple of 8 or the tile -> exercises sublane pad + ragged last block
    num_features = 5
    num_classes = 3

    x = jax.random.normal(kx, (batch, num_features), jnp.float32)
    params = init_params(key, num_features, num_classes)

    # Small tile so the test exercises a multi-step (pipelined, balanced) batch grid.
    out = fnn_forward(x, params, tile_b=64)
    out = jax.block_until_ready(out)

    ref = reference_forward(x, params)
    assert out.shape == (batch, num_classes)
    assert jnp.allclose(out, ref, atol=1e-3, rtol=1e-3), "Pallas output mismatch vs reference"

    print("KERNEL_OK")
</pallas_src>

<mosaic_0001>
module attributes {stable_mosaic.version = 11 : i64} {
  func.func @fnn_kernel(%arg0: i32, %arg1: memref<56x5xf32, #tpu.memory_space<vmem>>, %arg2: memref<5x64xbf16, #tpu.memory_space<vmem>>, %arg3: memref<1x64xf32, #tpu.memory_space<vmem>>, %arg4: memref<64x32xbf16, #tpu.memory_space<vmem>>, %arg5: memref<1x32xf32, #tpu.memory_space<vmem>>, %arg6: memref<32x16xbf16, #tpu.memory_space<vmem>>, %arg7: memref<1x16xf32, #tpu.memory_space<vmem>>, %arg8: memref<16x3xbf16, #tpu.memory_space<vmem>>, %arg9: memref<1x3xf32, #tpu.memory_space<vmem>>, %arg10: memref<56x3xf32, #tpu.memory_space<vmem>>) attributes {dimension_semantics = [#tpu.dimension_semantics<parallel>], iteration_bounds = array<i64: 4>, scalar_prefetch = 0 : i64, scratch_operands = 0 : i64, tpu.core_type = #tpu.core_type<tc>, window_params = [{transform_indices = @transform_0, window_bounds = array<i64: 56, 5>}, {pipeline_mode = #tpu.pipeline_mode<synchronous>, transform_indices = @transform_1, window_bounds = array<i64: 5, 64>}, {pipeline_mode = #tpu.pipeline_mode<synchronous>, transform_indices = @transform_2, window_bounds = array<i64: 1, 64>}, {pipeline_mode = #tpu.pipeline_mode<synchronous>, transform_indices = @transform_3, window_bounds = array<i64: 64, 32>}, {pipeline_mode = #tpu.pipeline_mode<synchronous>, transform_indices = @transform_4, window_bounds = array<i64: 1, 32>}, {pipeline_mode = #tpu.pipeline_mode<synchronous>, transform_indices = @transform_5, window_bounds = array<i64: 32, 16>}, {pipeline_mode = #tpu.pipeline_mode<synchronous>, transform_indices = @transform_6, window_bounds = array<i64: 1, 16>}, {pipeline_mode = #tpu.pipeline_mode<synchronous>, transform_indices = @transform_7, window_bounds = array<i64: 16, 3>}, {pipeline_mode = #tpu.pipeline_mode<synchronous>, transform_indices = @transform_8, window_bounds = array<i64: 1, 3>}, {transform_indices = @transform_9, window_bounds = array<i64: 56, 3>}]} {
    %c0 = arith.constant 0 : index
    %c0_0 = arith.constant 0 : index
    %0 = vector.load %arg1[%c0, %c0_0] : memref<56x5xf32, #tpu.memory_space<vmem>>, vector<56x5xf32>
    %1 = arith.truncf %0 : vector<56x5xf32> to vector<56x5xbf16>
    %c0_1 = arith.constant 0 : index
    %c0_2 = arith.constant 0 : index
    %2 = vector.load %arg2[%c0_1, %c0_2] : memref<5x64xbf16, #tpu.memory_space<vmem>>, vector<5x64xbf16>
    %cst = arith.constant dense<0.000000e+00> : vector<56x64xf32>
    %3 = tpu.matmul %1, %2, %cst {dimension_numbers = #tpu.dot_dimension_numbers<[1], [0], [0], [1], [0, 0, 1, 1], [], []>} : vector<56x5xbf16>, vector<5x64xbf16>, vector<56x64xf32> -> vector<56x64xf32>
    %c0_3 = arith.constant 0 : index
    %c0_4 = arith.constant 0 : index
    %4 = vector.load %arg3[%c0_3, %c0_4] : memref<1x64xf32, #tpu.memory_space<vmem>>, vector<1x64xf32>
    %5 = vector.broadcast %4 : vector<1x64xf32> to vector<56x64xf32>
    %6 = arith.addf %3, %5 : vector<56x64xf32>
    %cst_5 = arith.constant 0.000000e+00 : f32
    %7 = vector.broadcast %cst_5 : f32 to vector<56x64xf32>
    %8 = arith.maximumf %6, %7 : vector<56x64xf32>
    %9 = arith.truncf %8 : vector<56x64xf32> to vector<56x64xbf16>
    %c0_6 = arith.constant 0 : index
    %c0_7 = arith.constant 0 : index
    %10 = vector.load %arg4[%c0_6, %c0_7] : memref<64x32xbf16, #tpu.memory_space<vmem>>, vector<64x32xbf16>
    %cst_8 = arith.constant dense<0.000000e+00> : vector<56x32xf32>
    %11 = tpu.matmul %9, %10, %cst_8 {dimension_numbers = #tpu.dot_dimension_numbers<[1], [0], [0], [1], [0, 0, 1, 1], [], []>} : vector<56x64xbf16>, vector<64x32xbf16>, vector<56x32xf32> -> vector<56x32xf32>
    %c0_9 = arith.constant 0 : index
    %c0_10 = arith.constant 0 : index
    %12 = vector.load %arg5[%c0_9, %c0_10] : memref<1x32xf32, #tpu.memory_space<vmem>>, vector<1x32xf32>
    %13 = vector.broadcast %12 : vector<1x32xf32> to vector<56x32xf32>
    %14 = arith.addf %11, %13 : vector<56x32xf32>
    %cst_11 = arith.constant 0.000000e+00 : f32
    %15 = vector.broadcast %cst_11 : f32 to vector<56x32xf32>
    %16 = arith.maximumf %14, %15 : vector<56x32xf32>
    %17 = arith.truncf %16 : vector<56x32xf32> to vector<56x32xbf16>
    %c0_12 = arith.constant 0 : index
    %c0_13 = arith.constant 0 : index
    %18 = vector.load %arg6[%c0_12, %c0_13] : memref<32x16xbf16, #tpu.memory_space<vmem>>, vector<32x16xbf16>
    %cst_14 = arith.constant dense<0.000000e+00> : vector<56x16xf32>
    %19 = tpu.matmul %17, %18, %cst_14 {dimension_numbers = #tpu.dot_dimension_numbers<[1], [0], [0], [1], [0, 0, 1, 1], [], []>} : vector<56x32xbf16>, vector<32x16xbf16>, vector<56x16xf32> -> vector<56x16xf32>
    %c0_15 = arith.constant 0 : index
    %c0_16 = arith.constant 0 : index
    %20 = vector.load %arg7[%c0_15, %c0_16] : memref<1x16xf32, #tpu.memory_space<vmem>>, vector<1x16xf32>
    %21 = vector.broadcast %20 : vector<1x16xf32> to vector<56x16xf32>
    %22 = arith.addf %19, %21 : vector<56x16xf32>
    %cst_17 = arith.constant 0.000000e+00 : f32
    %23 = vector.broadcast %cst_17 : f32 to vector<56x16xf32>
    %24 = arith.maximumf %22, %23 : vector<56x16xf32>
    %25 = arith.truncf %24 : vector<56x16xf32> to vector<56x16xbf16>
    %c0_18 = arith.constant 0 : index
    %c0_19 = arith.constant 0 : index
    %26 = vector.load %arg8[%c0_18, %c0_19] : memref<16x3xbf16, #tpu.memory_space<vmem>>, vector<16x3xbf16>
    %cst_20 = arith.constant dense<0.000000e+00> : vector<56x3xf32>
    %27 = tpu.matmul %25, %26, %cst_20 {dimension_numbers = #tpu.dot_dimension_numbers<[1], [0], [0], [1], [0, 0, 1, 1], [], []>} : vector<56x16xbf16>, vector<16x3xbf16>, vector<56x3xf32> -> vector<56x3xf32>
    %c0_21 = arith.constant 0 : index
    %c0_22 = arith.constant 0 : index
    %28 = vector.load %arg9[%c0_21, %c0_22] : memref<1x3xf32, #tpu.memory_space<vmem>>, vector<1x3xf32>
    %29 = vector.broadcast %28 : vector<1x3xf32> to vector<56x3xf32>
    %30 = arith.addf %27, %29 : vector<56x3xf32>
    %c0_23 = arith.constant 0 : index
    %c0_24 = arith.constant 0 : index
    %31 = vector.load %arg10[%c0_23, %c0_24] : memref<56x3xf32, #tpu.memory_space<vmem>>, vector<56x3xf32>
    tpu.vector_store %arg10[%c0_23, %c0_24], %30 {strides = array<i32>} : memref<56x3xf32, #tpu.memory_space<vmem>>, vector<56x3xf32>,
    return
  }
  func.func @transform_0(%arg0: i32) -> (i32, i32) {
    %c0_i32 = arith.constant 0 : i32
    %c0_i32_0 = arith.constant 0 : i32
    return %arg0, %c0_i32 : i32, i32
  }
  func.func @transform_1(%arg0: i32) -> (i32, i32) {
    %c0_i32 = arith.constant 0 : i32
    %c0_i32_0 = arith.constant 0 : i32
    %c0_i32_1 = arith.constant 0 : i32
    return %c0_i32, %c0_i32_0 : i32, i32
  }
  func.func @transform_2(%arg0: i32) -> (i32, i32) {
    %c0_i32 = arith.constant 0 : i32
    %c0_i32_0 = arith.constant 0 : i32
    %c0_i32_1 = arith.constant 0 : i32
    return %c0_i32, %c0_i32_0 : i32, i32
  }
  func.func @transform_3(%arg0: i32) -> (i32, i32) {
    %c0_i32 = arith.constant 0 : i32
    %c0_i32_0 = arith.constant 0 : i32
    %c0_i32_1 = arith.constant 0 : i32
    return %c0_i32, %c0_i32_0 : i32, i32
  }
  func.func @transform_4(%arg0: i32) -> (i32, i32) {
    %c0_i32 = arith.constant 0 : i32
    %c0_i32_0 = arith.constant 0 : i32
    %c0_i32_1 = arith.constant 0 : i32
    return %c0_i32, %c0_i32_0 : i32, i32
  }
  func.func @transform_5(%arg0: i32) -> (i32, i32) {
    %c0_i32 = arith.constant 0 : i32
    %c0_i32_0 = arith.constant 0 : i32
    %c0_i32_1 = arith.constant 0 : i32
    return %c0_i32, %c0_i32_0 : i32, i32
  }
  func.func @transform_6(%arg0: i32) -> (i32, i32) {
    %c0_i32 = arith.constant 0 : i32
    %c0_i32_0 = arith.constant 0 : i32
    %c0_i32_1 = arith.constant 0 : i32
    return %c0_i32, %c0_i32_0 : i32, i32
  }
  func.func @transform_7(%arg0: i32) -> (i32, i32) {
    %c0_i32 = arith.constant 0 : i32
    %c0_i32_0 = arith.constant 0 : i32
    %c0_i32_1 = arith.constant 0 : i32
    return %c0_i32, %c0_i32_0 : i32, i32
  }
  func.func @transform_8(%arg0: i32) -> (i32, i32) {
    %c0_i32 = arith.constant 0 : i32
    %c0_i32_0 = arith.constant 0 : i32
    %c0_i32_1 = arith.constant 0 : i32
    return %c0_i32, %c0_i32_0 : i32, i32
  }
  func.func @transform_9(%arg0: i32) -> (i32, i32) {
    %c0_i32 = arith.constant 0 : i32
    %c0_i32_0 = arith.constant 0 : i32
    return %arg0, %c0_i32 : i32, i32
  }
}

</mosaic_0001>

<llo_original>
// kernel: tpu_custom_call.1
$region0: #{tpu_custom_call.1}
  #allocation0 [shape = 'u32[]', space=smem, size = 0x4, offset = 0x4, fixed_abs, tag = 'smem constant byte address 0x4 - core index']
  #allocation1 [shape = 'u32[144,128]{1,0:T(1,128)}', space=vmem, size = 0x12000, scoped, tag = 'internal scratch']
  %s0 = inlined_call_operand.vmem [shape: f32[208,5], index: 0, kind: input, shape index: {}]
  %s1 = inlined_call_operand.vmem [shape: bf16[5,64], index: 1, kind: input, shape index: {}]
  %s2 = inlined_call_operand.vmem [shape: f32[1,64], index: 2, kind: input, shape index: {}]
  %s3 = inlined_call_operand.vmem [shape: bf16[64,32], index: 3, kind: input, shape index: {}]
  %s4 = inlined_call_operand.vmem [shape: f32[1,32], index: 4, kind: input, shape index: {}]
  %s5 = inlined_call_operand.vmem [shape: bf16[32,16], index: 5, kind: input, shape index: {}]
  %s6 = inlined_call_operand.vmem [shape: f32[1,16], index: 6, kind: input, shape index: {}]
  %s7 = inlined_call_operand.vmem [shape: bf16[16,3], index: 7, kind: input, shape index: {}]
  %s8 = inlined_call_operand.vmem [shape: f32[1,3], index: 8, kind: input, shape index: {}]
  %s9 = inlined_call_operand.vmem [shape: f32[208,3], index: 9, kind: output, shape index: {}]
  %s10 = sld [smem:[#allocation0]]
  $region117: #{tpu_custom_call.1} parent=0
    _
  %s12 = ssub.s32 1, %s10
  %s13 = scalar_select 0, %s12, %s10
  $region1: #{tpu_custom_call.1} parent=0
    #allocation2 [shape = 'u8[57344]{0}', space=vmem, size = 0xe000, scoped, tag = 'output window, operand 0']
    loop: start=0, step=1, limit=6
    $region2: #{tpu_custom_call.1} parent=1 // loop_pre_header
      _
    $region3: #{tpu_custom_call.1} parent=1 // loop_header
      %s15 = sphi 0, %s19
      %p16 = scmp.ge.s32.totalorder %s15, 6
      %s25 = sphi 0, %s27
      %s28 = sphi 0, %s25
      %s29 = sphi 0, %s28
      %s45 = sphi 0, %s29
      %s49 = sphi 0, %s49
      %s51 = sphi 0, %s49
      %s52 = sphi 0, %s51
      %s66 = sphi 0, %s52
      %s70 = sphi 0, %s70
      %s72 = sphi 0, %s70
      %s73 = sphi 0, %s72
      %s87 = sphi 0, %s73
      %s91 = sphi 0, %s91
      %s93 = sphi 0, %s91
      %s94 = sphi 0, %s93
      %s108 = sphi 0, %s94
      %s112 = sphi 0, %s112
      %s114 = sphi 0, %s112
      %s115 = sphi 0, %s114
      %s129 = sphi 0, %s115
      %s133 = sphi 0, %s133
      %s135 = sphi 0, %s133
      %s136 = sphi 0, %s135
      %s150 = sphi 0, %s136
      %s154 = sphi 0, %s154
      %s156 = sphi 0, %s154
      %s157 = sphi 0, %s156
      %s171 = sphi 0, %s157
      %s175 = sphi 0, %s175
      %s177 = sphi 0, %s175
      %s178 = sphi 0, %s177
      %s192 = sphi 0, %s178
      %s196 = sphi 0, %s196
      %s198 = sphi 0, %s196
      %s199 = sphi 0, %s198
      %s213 = sphi 0, %s199
      %s219 = sphi 0, %s221
      %s222 = sphi 0, %s219
      %s223 = sphi 0, %s222
      %s239 = sphi 0, %s223
    $region4: #{tpu_custom_call.1} parent=1 // loop_header_branch
      %18 = sbr.rel (%p16) target = $region8
    $region5: #{tpu_custom_call.1} parent=1 // loop_body
      %s20 = ssub.s32 %s15, 1
      %s21 = ssub.s32 %s15, 2
      %s22 = sadd.s32 %s15, 1
      %s23 = ssub.s32 %s15, %s22
      %p24 = scmp.eq.s32.totalorder %s23, 0
      %s26 = sadd.s32 %s25, 1
      %s27 = scalar_select %p24, %s25, %s26
      %p30 = pneg %p24
      %p31 = scmp.eq.s32.totalorder %s15, 3
      %p32 = por %p30, %p31
      %p33 = scmp.ne.s32.totalorder %s25, %s28
      %p34 = scmp.eq.s32.totalorder %s15, 0
      %p35 = por %p33, %p34
      %p36 = scmp.ne.s32.totalorder %s25, %s28
      %p37 = scmp.eq.s32.totalorder %s20, 3
      %p38 = por %p36, %p37
      %p39 = scmp.ne.s32.totalorder %s28, %s29
      %p40 = scmp.eq.s32.totalorder %s20, 0
      %p41 = por %p39, %p40
      %p42 = scmp.ne.s32.totalorder %s28, %s29
      %p43 = scmp.eq.s32.totalorder %s21, 3
      %p44 = por %p42, %p43
      %p46 = scmp.ne.s32.totalorder %s29, %s45
      %p47 = scmp.eq.s32.totalorder %s21, 0
      %p48 = por %p46, %p47
      %s50 = sadd.s32 %s49, 1
      %p53 = scmp.eq.s32.totalorder %s15, 3
      %p54 = scmp.ne.s32.totalorder %s49, %s51
      %p55 = scmp.eq.s32.totalorder %s15, 0
      %p56 = por %p54, %p55
      %p57 = scmp.ne.s32.totalorder %s49, %s51
      %p58 = scmp.eq.s32.totalorder %s20, 3
      %p59 = por %p57, %p58
      %p60 = scmp.ne.s32.totalorder %s51, %s52
      %p61 = scmp.eq.s32.totalorder %s20, 0
      %p62 = por %p60, %p61
      %p63 = scmp.ne.s32.totalorder %s51, %s52
      %p64 = scmp.eq.s32.totalorder %s21, 3
      %p65 = por %p63, %p64
      %p67 = scmp.ne.s32.totalorder %s52, %s66
      %p68 = scmp.eq.s32.totalorder %s21, 0
      %p69 = por %p67, %p68
      %s71 = sadd.s32 %s70, 1
      %p74 = scmp.eq.s32.totalorder %s15, 3
      %p75 = scmp.ne.s32.totalorder %s70, %s72
      %p76 = scmp.eq.s32.totalorder %s15, 0
      %p77 = por %p75, %p76
      %p78 = scmp.ne.s32.totalorder %s70, %s72
      %p79 = scmp.eq.s32.totalorder %s20, 3
      %p80 = por %p78, %p79
      %p81 = scmp.ne.s32.totalorder %s72, %s73
      %p82 = scmp.eq.s32.totalorder %s20, 0
      %p83 = por %p81, %p82
      %p84 = scmp.ne.s32.totalorder %s72, %s73
      %p85 = scmp.eq.s32.totalorder %s21, 3
      %p86 = por %p84, %p85
      %p88 = scmp.ne.s32.totalorder %s73, %s87
      %p89 = scmp.eq.s32.totalorder %s21, 0
      %p90 = por %p88, %p89
      %s92 = sadd.s32 %s91, 1
      %p95 = scmp.eq.s32.totalorder %s15, 3
      %p96 = scmp.ne.s32.totalorder %s91, %s93
      %p97 = scmp.eq.s32.totalorder %s15, 0
      %p98 = por %p96, %p97
      %p99 = scmp.ne.s32.totalorder %s91, %s93
      %p100 = scmp.eq.s32.totalorder %s20, 3
      %p101 = por %p99, %p100
      %p102 = scmp.ne.s32.totalorder %s93, %s94
      %p103 = scmp.eq.s32.totalorder %s20, 0
      %p104 = por %p102, %p103
      %p105 = scmp.ne.s32.totalorder %s93, %s94
      %p106 = scmp.eq.s32.totalorder %s21, 3
      %p107 = por %p105, %p106
      %p109 = scmp.ne.s32.totalorder %s94, %s108
      %p110 = scmp.eq.s32.totalorder %s21, 0
      %p111 = por %p109, %p110
      %s113 = sadd.s32 %s112, 1
      %p116 = scmp.eq.s32.totalorder %s15, 3
      %p117 = scmp.ne.s32.totalorder %s112, %s114
      %p118 = scmp.eq.s32.totalorder %s15, 0
      %p119 = por %p117, %p118
      %p120 = scmp.ne.s32.totalorder %s112, %s114
      %p121 = scmp.eq.s32.totalorder %s20, 3
      %p122 = por %p120, %p121
      %p123 = scmp.ne.s32.totalorder %s114, %s115
      %p124 = scmp.eq.s32.totalorder %s20, 0
      %p125 = por %p123, %p124
      %p126 = scmp.ne.s32.totalorder %s114, %s115
      %p127 = scmp.eq.s32.totalorder %s21, 3
      %p128 = por %p126, %p127
      %p130 = scmp.ne.s32.totalorder %s115, %s129
      %p131 = scmp.eq.s32.totalorder %s21, 0
      %p132 = por %p130, %p131
      %s134 = sadd.s32 %s133, 1
      %p137 = scmp.eq.s32.totalorder %s15, 3
      %p138 = scmp.ne.s32.totalorder %s133, %s135
      %p139 = scmp.eq.s32.totalorder %s15, 0
      %p140 = por %p138, %p139
      %p141 = scmp.ne.s32.totalorder %s133, %s135
      %p142 = scmp.eq.s32.totalorder %s20, 3
      %p143 = por %p141, %p142
      %p144 = scmp.ne.s32.totalorder %s135, %s136
      %p145 = scmp.eq.s32.totalorder %s20, 0
      %p146 = por %p144, %p145
      %p147 = scmp.ne.s32.totalorder %s135, %s136
      %p148 = scmp.eq.s32.totalorder %s21, 3
      %p149 = por %p147, %p148
      %p151 = scmp.ne.s32.totalorder %s136, %s150
      %p152 = scmp.eq.s32.totalorder %s21, 0
      %p153 = por %p151, %p152
      %s155 = sadd.s32 %s154, 1
      %p158 = scmp.eq.s32.totalorder %s15, 3
      %p159 = scmp.ne.s32.totalorder %s154, %s156
      %p160 = scmp.eq.s32.totalorder %s15, 0
      %p161 = por %p159, %p160
      %p162 = scmp.ne.s32.totalorder %s154, %s156
      %p163 = scmp.eq.s32.totalorder %s20, 3
      %p164 = por %p162, %p163
      %p165 = scmp.ne.s32.totalorder %s156, %s157
      %p166 = scmp.eq.s32.totalorder %s20, 0
      %p167 = por %p165, %p166
      %p168 = scmp.ne.s32.totalorder %s156, %s157
      %p169 = scmp.eq.s32.totalorder %s21, 3
      %p170 = por %p168, %p169
      %p172 = scmp.ne.s32.totalorder %s157, %s171
      %p173 = scmp.eq.s32.totalorder %s21, 0
      %p174 = por %p172, %p173
      %s176 = sadd.s32 %s175, 1
      %p179 = scmp.eq.s32.totalorder %s15, 3
      %p180 = scmp.ne.s32.totalorder %s175, %s177
      %p181 = scmp.eq.s32.totalorder %s15, 0
      %p182 = por %p180, %p181
      %p183 = scmp.ne.s32.totalorder %s175, %s177
      %p184 = scmp.eq.s32.totalorder %s20, 3
      %p185 = por %p183, %p184
      %p186 = scmp.ne.s32.totalorder %s177, %s178
      %p187 = scmp.eq.s32.totalorder %s20, 0
      %p188 = por %p186, %p187
      %p189 = scmp.ne.s32.totalorder %s177, %s178
      %p190 = scmp.eq.s32.totalorder %s21, 3
      %p191 = por %p189, %p190
      %p193 = scmp.ne.s32.totalorder %s178, %s192
      %p194 = scmp.eq.s32.totalorder %s21, 0
      %p195 = por %p193, %p194
      %s197 = sadd.s32 %s196, 1
      %p200 = scmp.eq.s32.totalorder %s15, 3
      %p201 = scmp.ne.s32.totalorder %s196, %s198
      %p202 = scmp.eq.s32.totalorder %s15, 0
      %p203 = por %p201, %p202
      %p204 = scmp.ne.s32.totalorder %s196, %s198
      %p205 = scmp.eq.s32.totalorder %s20, 3
      %p206 = por %p204, %p205
      %p207 = scmp.ne.s32.totalorder %s198, %s199
      %p208 = scmp.eq.s32.totalorder %s20, 0
      %p209 = por %p207, %p208
      %p210 = scmp.ne.s32.totalorder %s198, %s199
      %p211 = scmp.eq.s32.totalorder %s21, 3
      %p212 = por %p210, %p211
      %p214 = scmp.ne.s32.totalorder %s199, %s213
      %p215 = scmp.eq.s32.totalorder %s21, 0
      %p216 = por %p214, %p215
      %s217 = ssub.s32 %s15, %s22
      %p218 = scmp.eq.s32.totalorder %s217, 0
      %s220 = sadd.s32 %s219, 1
      %s221 = scalar_select %p218, %s219, %s220
      %p224 = pneg %p218
      %p225 = scmp.eq.s32.totalorder %s15, 3
      %p226 = por %p224, %p225
      %p227 = scmp.ne.s32.totalorder %s219, %s222
      %p228 = scmp.eq.s32.totalorder %s15, 0
      %p229 = por %p227, %p228
      %p230 = scmp.ne.s32.totalorder %s219, %s222
      %p231 = scmp.eq.s32.totalorder %s20, 3
      %p232 = por %p230, %p231
      %p233 = scmp.ne.s32.totalorder %s222, %s223
      %p234 = scmp.eq.s32.totalorder %s20, 0
      %p235 = por %p233, %p234
      %p236 = scmp.ne.s32.totalorder %s222, %s223
      %p237 = scmp.eq.s32.totalorder %s21, 3
      %p238 = por %p236, %p237
      %p240 = scmp.ne.s32.totalorder %s223, %s239
      %p241 = scmp.eq.s32.totalorder %s21, 0
      %p242 = por %p240, %p241
      %p243 = scmp.le.s32.totalorder 1, %s15
      %p244 = scmp.lt.s32.totalorder %s15, 5
      %p245 = pnand %p243, %p244
      %p246 = pneg %p245
      // Predicated region
      $region9: #{tpu_custom_call.1} parent=5 // pred_check
        _
      $region10: #{tpu_custom_call.1} parent=5 // pred_check_branch
        %248 = sbr.rel (%p245) target = $region12
      $region11: #{tpu_custom_call.1} parent=5 // pred_region
        %s249 = ssub.s32 %s15, 1
        // Predicated region
        $region13: #{tpu_custom_call.1} parent=11 // pred_check
          %p250 = pneg %p62
        $region14: #{tpu_custom_call.1} parent=11 // pred_check_branch
          %252 = sbr.rel (%p250) target = $region16
        $region15: #{tpu_custom_call.1} parent=11 // pred_region
          _
        $region16: #{tpu_custom_call.1} parent=11 // pred_fallthru
          _
        // Predicated region
        $region17: #{tpu_custom_call.1} parent=11 // pred_check
          %p253 = pneg %p83
        $region18: #{tpu_custom_call.1} parent=11 // pred_check_branch
          %255 = sbr.rel (%p253) target = $region20
        $region19: #{tpu_custom_call.1} parent=11 // pred_region
          _
        $region20: #{tpu_custom_call.1} parent=11 // pred_fallthru
          _
        // Predicated region
        $region21: #{tpu_custom_call.1} parent=11 // pred_check
          %p256 = pneg %p104
        $region22: #{tpu_custom_call.1} parent=11 // pred_check_branch
          %258 = sbr.rel (%p256) target = $region24
        $region23: #{tpu_custom_call.1} parent=11 // pred_region
          _
        $region24: #{tpu_custom_call.1} parent=11 // pred_fallthru
          _
        // Predicated region
        $region25: #{tpu_custom_call.1} parent=11 // pred_check
          %p259 = pneg %p125
        $region26: #{tpu_custom_call.1} parent=11 // pred_check_branch
          %261 = sbr.rel (%p259) target = $region28
        $region27: #{tpu_custom_call.1} parent=11 // pred_region
          _
        $region28: #{tpu_custom_call.1} parent=11 // pred_fallthru
          _
        // Predicated region
        $region29: #{tpu_custom_call.1} parent=11 // pred_check
          %p262 = pneg %p146
        $region30: #{tpu_custom_call.1} parent=11 // pred_check_branch
          %264 = sbr.rel (%p262) target = $region32
        $region31: #{tpu_custom_call.1} parent=11 // pred_region
          _
        $region32: #{tpu_custom_call.1} parent=11 // pred_fallthru
          _
        // Predicated region
        $region33: #{tpu_custom_call.1} parent=11 // pred_check
          %p265 = pneg %p167
        $region34: #{tpu_custom_call.1} parent=11 // pred_check_branch
          %267 = sbr.rel (%p265) target = $region36
        $region35: #{tpu_custom_call.1} parent=11 // pred_region
          _
        $region36: #{tpu_custom_call.1} parent=11 // pred_fallthru
          _
        // Predicated region
        $region37: #{tpu_custom_call.1} parent=11 // pred_check
          %p268 = pneg %p188
        $region38: #{tpu_custom_call.1} parent=11 // pred_check_branch
          %270 = sbr.rel (%p268) target = $region40
        $region39: #{tpu_custom_call.1} parent=11 // pred_region
          _
        $region40: #{tpu_custom_call.1} parent=11 // pred_fallthru
          _
        // Predicated region
        $region41: #{tpu_custom_call.1} parent=11 // pred_check
          %p271 = pneg %p209
        $region42: #{tpu_custom_call.1} parent=11 // pred_check_branch
          %273 = sbr.rel (%p271) target = $region44
        $region43: #{tpu_custom_call.1} parent=11 // pred_region
          _
        $region44: #{tpu_custom_call.1} parent=11 // pred_fallthru
          _
      $region12: #{tpu_custom_call.1} parent=5 // pred_fallthru
        _
      %p274 = scmp.lt.s32.totalorder %s15, 4
      // Predicated region
      $region45: #{tpu_custom_call.1} parent=5 // pred_check
        %p275 = pneg %p274
      $region46: #{tpu_custom_call.1} parent=5 // pred_check_branch
        %277 = sbr.rel (%p275) target = $region48
      $region47: #{tpu_custom_call.1} parent=5 // pred_region
        // Predicated region
        $region49: #{tpu_custom_call.1} parent=47 // pred_check
          %p278 = pneg %p35
        $region50: #{tpu_custom_call.1} parent=47 // pred_check_branch
          %280 = sbr.rel (%p278) target = $region52
        $region51: #{tpu_custom_call.1} parent=47 // pred_region
          %s281 = smul.u32 7, %s15
          %s282 = ssub.s32 26, %s281
          %p283 = scmp.lt.s32.totalorder %s282, 7
          %s284 = scalar_select %p283, %s282, 7
          %s285 = smul.u32 128, %s284
          %p286 = scmp.lt.s32.totalorder %s281, 25
          %s287 = scalar_select %p286, %s281, 25
          %s288 = smul.addr %s287, 8
          %s289 = scalar_lea.vmem %s0, %s288
          %s290 = smul.u32 7, %s15
          %s291 = ssub.s32 26, %s290
          %p292 = scmp.lt.s32.totalorder %s291, 7
          %s293 = scalar_select %p292, %s291, 7
          %s294 = smul.u32 128, %s293
        $region52: #{tpu_custom_call.1} parent=47 // pred_fallthru
          _
      $region48: #{tpu_custom_call.1} parent=5 // pred_fallthru
        _
      %p295 = scmp.le.s32.totalorder 1, %s15
      %p296 = scmp.lt.s32.totalorder %s15, 5
      %p297 = pnand %p295, %p296
      %p298 = pneg %p297
      // Predicated region
      $region53: #{tpu_custom_call.1} parent=5 // pred_check
        _
      $region54: #{tpu_custom_call.1} parent=5 // pred_check_branch
        %300 = sbr.rel (%p297) target = $region56
      $region55: #{tpu_custom_call.1} parent=5 // pred_region
        %s301 = ssub.s32 %s15, 1
        %s302 = smul.u32 7, %s20
        %s303 = ssub.s32 26, %s302
        %p304 = scmp.lt.s32.totalorder %s303, 7
        %s305 = scalar_select %p304, %s303, 7
        %s306 = smul.u32 128, %s305
        %p307 = scmp.lt.s32.totalorder %s302, 25
        %s308 = scalar_select %p307, %s302, 25
        %s309 = smul.addr %s308, 8
        %s310 = scalar_lea.vmem %s0, %s309
        %p311 = pneg %p41
        %p312 = pneg %p38
        %p313 = pneg %p62
        %p314 = pneg %p59
        %p315 = pneg %p83
        %p316 = pneg %p80
        %p317 = pneg %p104
        %p318 = pneg %p101
        %p319 = pneg %p125
        %p320 = pneg %p122
        %p321 = pneg %p146
        %p322 = pneg %p143
        %p323 = pneg %p167
        %p324 = pneg %p164
        %p325 = pneg %p188
        %p326 = pneg %p185
        %p327 = pneg %p209
        %p328 = pneg %p206
        %p329 = pneg %p235
        %p330 = pneg %p232
        %s331 = sand.u32 %s222, 1
        %s332 = sand.u32 %s222, 1
        %s333 = smul.addr %s332, 56
        %s334 = scalar_lea.vmem [#allocation2], %s333
        %s335 = smul.u32 7, %s20
        %s336 = ssub.s32 26, %s335
        %p337 = scmp.lt.s32.totalorder %s336, 7
        %s338 = scalar_select %p337, %s336, 7
        %s339 = smul.u32 128, %s338
        %p340 = scmp.lt.s32.totalorder %s335, 25
        %s341 = scalar_select %p340, %s335, 25
        %s342 = smul.addr %s341, 8
        %s343 = scalar_lea.vmem %s0, %s342
        %s344 = smul.u32 7, %s20
        %s345 = ssub.s32 26, %s344
        %p346 = scmp.lt.s32.totalorder %s345, 7
        %s347 = scalar_select %p346, %s345, 7
        %s348 = smul.u32 128, %s347
        %s349 = smul.u32 7, %s20
        %s350 = ssub.s32 26, %s349
        %p351 = scmp.lt.s32.totalorder %s350, 7
        %s352 = scalar_select %p351, %s350, 7
        %s353 = smul.u32 128, %s352
        %v355 = vld [vmem:[%s343] sm:$0xff]
        %v356 = vld [vmem:[%s343 + $0x8] sm:$0xff]
        %v357 = vld [vmem:[%s343 + $0x10] sm:$0xff]
        %v358 = vld [vmem:[%s343 + $0x18] sm:$0xff]
        %v359 = vld [vmem:[%s343 + $0x20] sm:$0xff]
        %v360 = vld [vmem:[%s343 + $0x28] sm:$0xff]
        %v361 = vld [vmem:[%s343 + $0x30] sm:$0xff]
        %v362 = vpack.c.bf16 %v356, %v355
        %v363 = vpack.c.bf16 %v358, %v357
        %v364 = vpack.c.bf16 %v360, %v359
        %v365 = vpack.c.bf16 %v361, %v361
        %v366 = vld [vmem:[%s1] sm:$0x7]
        %v367 = vld [vmem:[%s2] sm:$0x1]
        %v369 = vlaneseq
        %v370 = vshrl.u32 %v369, 7
        %v371 = vsub.s32 0, %v370
        %v372 = vrot.slane %v367, %v371
        %vm374 = vcmask 39936
        %v376 = vsel %vm374, %v362, 0
        %v379 = vsel %vm374, %v363, 0
        %v382 = vsel %vm374, %v364, 0
        %v385 = vsel %vm374, %v365, 0
        %vm387 = vcmask 1041408
        %vm388 = vcmask 1042432
        %v389 = vsel %vm387, 4294967295, 65535
        %v390 = vsel %vm388, %v389, 0
        %v392 = vand.u32 %v366, %v390
        %394 = vmatprep.subr.bf16.mxu0 0
        %395 = vmatpush1.bf16.msra.mxu0 %v392
        %396 = vmatprep.subr.bf16.mxu0 0
        %397 = vmatpush1.bf16.msra.mxu0 0
        %398 = vmatprep.subr.bf16.mxu0 0
        %399 = vmatpush1.bf16.msra.mxu0 0
        %400 = vmatprep.subr.bf16.mxu0 0
        %401 = vmatpush1.bf16.msra.mxu0 0
        %402 = vmatprep.subr.bf16.mxu0 0
        %403 = vmatpush1.bf16.msra.mxu0 0
        %404 = vmatprep.subr.bf16.mxu0 0
        %405 = vmatpush1.bf16.msra.mxu0 0
        %406 = vmatprep.subr.bf16.mxu0 0
        %407 = vmatpush1.bf16.msra.mxu0 0
        %408 = vmatprep.subr.bf16.mxu0 0
        %409 = vmatpush1.bf16.msra.mxu0 0
        %410 = vmatprep.subr.bf16.mxu0 0
        %411 = vmatpush1.bf16.msra.mxu0 0
        %412 = vmatprep.subr.bf16.mxu0 0
        %413 = vmatpush1.bf16.msra.mxu0 0
        %414 = vmatprep.subr.bf16.mxu0 0
        %415 = vmatpush1.bf16.msra.mxu0 0
        %416 = vmatprep.subr.bf16.mxu0 0
        %417 = vmatpush1.bf16.msra.mxu0 0
        %418 = vmatprep.subr.bf16.mxu0 0
        %419 = vmatpush1.bf16.msra.mxu0 0
        %420 = vmatprep.subr.bf16.mxu0 0
        %421 = vmatpush1.bf16.msra.mxu0 0
        %422 = vmatprep.subr.bf16.mxu0 0
        %423 = vmatpush1.bf16.msra.mxu0 0
        %424 = vmatprep.subr.bf16.mxu0 0
        %425 = vmatpush1.bf16.msra.mxu0 0
        %426 = vmatprep.mubr.bf16.mxu0 0
        %427 = vmatmul.mubr.bf16.gmra.mrb[0].mxu0 %v376
        %v428 = vpop.f32.mrb[0].mxu0
        %v429 = vadd.f32 %v372, %v428
        %v430 = vpop.f32.mrb[0].mxu0
        %v431 = vpop.f32.mrb[0].mxu0
        %v432 = vadd.f32 %v372, %v431
        %v433 = vpop.f32.mrb[0].mxu0
        %434 = vmatprep.mubr.bf16.mxu0 0
        %435 = vmatmul.mubr.bf16.gmra.mrb[0].mxu0 %v379
        %v436 = vpop.f32.mrb[0].mxu0
        %v437 = vadd.f32 %v372, %v436
        %v438 = vpop.f32.mrb[0].mxu0
        %v439 = vpop.f32.mrb[0].mxu0
        %v440 = vadd.f32 %v372, %v439
        %v441 = vpop.f32.mrb[0].mxu0
        %442 = vmatprep.mubr.bf16.mxu0 0
        %443 = vmatmul.mubr.bf16.gmra.mrb[0].mxu0 %v382
        %v444 = vpop.f32.mrb[0].mxu0
        %v445 = vadd.f32 %v372, %v444
        %v446 = vpop.f32.mrb[0].mxu0
        %v447 = vpop.f32.mrb[0].mxu0
        %v448 = vadd.f32 %v372, %v447
        %v449 = vpop.f32.mrb[0].mxu0
        %450 = vmatprep.mubr.bf16.mxu0 0
        %451 = vmatmul.mubr.bf16.gmra.mrb[0].mxu0 %v385
        %v452 = vpop.f32.mrb[0].mxu0
        %v453 = vadd.f32 %v372, %v452
        %v454 = vpop.f32.mrb[0].mxu0
        %v455 = vpop.f32.mrb[0].mxu0
        %v456 = vpop.f32.mrb[0].mxu0
        %457 = vdwg.mxu0
        %v458 = vmax.f32 %v429, 0.0
        %v459 = vmax.f32 %v432, 0.0
        %v460 = vmax.f32 %v437, 0.0
        %v461 = vmax.f32 %v440, 0.0
        %v462 = vmax.f32 %v445, 0.0
        %v463 = vmax.f32 %v448, 0.0
        %v464 = vmax.f32 %v453, 0.0
        %v465 = vpack.c.bf16 %v459, %v458
        %v466 = vpack.c.bf16 %v461, %v460
        %v467 = vpack.c.bf16 %v463, %v462
        %v468 = vpack.c.bf16 %v464, %v464
        %v469 = vld [vmem:[%s3] sm:$0xf]
        %v470 = vld [vmem:[%s3 + $0x4] sm:$0xf]
        %v471 = vld [vmem:[%s3 + $0x8] sm:$0xf]
        %v472 = vld [vmem:[%s3 + $0xc] sm:$0xf]
        %v473 = vld [vmem:[%s3 + $0x10] sm:$0xf]
        %v474 = vld [vmem:[%s3 + $0x14] sm:$0xf]
        %v475 = vld [vmem:[%s3 + $0x18] sm:$0xf]
        %v476 = vld [vmem:[%s3 + $0x1c] sm:$0xf]
        %v477 = vld [vmem:[%s4] sm:$0x1]
        %v479 = vlaneseq
        %v480 = vshrl.u32 %v479, 7
        %v481 = vsub.s32 0, %v480
        %v482 = vrot.slane %v477, %v481
        %v492 = vunpack.c.l.b16 %v469
        %v493 = vunpack.c.l.b16 %v470
        %v494 = vunpack.c.l.b16 %v471
        %v495 = vunpack.c.l.b16 %v472
        %v496 = vunpack.c.l.b16 %v473
        %v497 = vunpack.c.l.b16 %v474
        %v498 = vunpack.c.l.b16 %v475
        %v499 = vunpack.c.l.b16 %v476
        %v500 = vpack.c.b16 %v493, %v492
        %v501 = vpack.c.b16 %v495, %v494
        %v502 = vpack.c.b16 %v497, %v496
        %v503 = vpack.c.b16 %v499, %v498
        %vm508 = vcmask 523264
        %v510 = vsel %vm508, %v465, 0
        %v513 = vsel %vm508, %v466, 0
        %v516 = vsel %vm508, %v467, 0
        %v519 = vsel %vm508, %v468, 0
        %521 = vmatprep.subr.bf16.mxu0 0
        %522 = vmatpush1.bf16.msra.mxu0 %v500
        %523 = vmatprep.subr.bf16.mxu0 0
        %524 = vmatpush1.bf16.msra.mxu0 %v501
        %525 = vmatprep.subr.bf16.mxu0 0
        %526 = vmatpush1.bf16.msra.mxu0 %v502
        %527 = vmatprep.subr.bf16.mxu0 0
        %528 = vmatpush1.bf16.msra.mxu0 %v503
        %529 = vmatprep.subr.bf16.mxu0 0
        %530 = vmatpush1.bf16.msra.mxu0 0
        %531 = vmatprep.subr.bf16.mxu0 0
        %532 = vmatpush1.bf16.msra.mxu0 0
        %533 = vmatprep.subr.bf16.mxu0 0
        %534 = vmatpush1.bf16.msra.mxu0 0
        %535 = vmatprep.subr.bf16.mxu0 0
        %536 = vmatpush1.bf16.msra.mxu0 0
        %537 = vmatprep.subr.bf16.mxu0 0
        %538 = vmatpush1.bf16.msra.mxu0 0
        %539 = vmatprep.subr.bf16.mxu0 0
        %540 = vmatpush1.bf16.msra.mxu0 0
        %541 = vmatprep.subr.bf16.mxu0 0
        %542 = vmatpush1.bf16.msra.mxu0 0
        %543 = vmatprep.subr.bf16.mxu0 0
        %544 = vmatpush1.bf16.msra.mxu0 0
        %545 = vmatprep.subr.bf16.mxu0 0
        %546 = vmatpush1.bf16.msra.mxu0 0
        %547 = vmatprep.subr.bf16.mxu0 0
        %548 = vmatpush1.bf16.msra.mxu0 0
        %549 = vmatprep.subr.bf16.mxu0 0
        %550 = vmatpush1.bf16.msra.mxu0 0
        %551 = vmatprep.subr.bf16.mxu0 0
        %552 = vmatpush1.bf16.msra.mxu0 0
        %553 = vmatprep.mubr.bf16.mxu0 0
        %554 = vmatmul.mubr.bf16.gmra.mrb[0].mxu0 %v510
        %v555 = vpop.f32.mrb[0].mxu0
        %v556 = vadd.f32 %v482, %v555
        %v557 = vpop.f32.mrb[0].mxu0
        %v558 = vpop.f32.mrb[0].mxu0
        %v559 = vadd.f32 %v482, %v558
        %v560 = vpop.f32.mrb[0].mxu0
        %561 = vmatprep.mubr.bf16.mxu0 0
        %562 = vmatmul.mubr.bf16.gmra.mrb[0].mxu0 %v513
        %v563 = vpop.f32.mrb[0].mxu0
        %v564 = vadd.f32 %v482, %v563
        %v565 = vpop.f32.mrb[0].mxu0
        %v566 = vpop.f32.mrb[0].mxu0
        %v567 = vadd.f32 %v482, %v566
        %v568 = vpop.f32.mrb[0].mxu0
        %569 = vmatprep.mubr.bf16.mxu0 0
        %570 = vmatmul.mubr.bf16.gmra.mrb[0].mxu0 %v516
        %v571 = vpop.f32.mrb[0].mxu0
        %v572 = vadd.f32 %v482, %v571
        %v573 = vpop.f32.mrb[0].mxu0
        %v574 = vpop.f32.mrb[0].mxu0
        %v575 = vadd.f32 %v482, %v574
        %v576 = vpop.f32.mrb[0].mxu0
        %577 = vmatprep.mubr.bf16.mxu0 0
        %578 = vmatmul.mubr.bf16.gmra.mrb[0].mxu0 %v519
        %v579 = vpop.f32.mrb[0].mxu0
        %v580 = vadd.f32 %v482, %v579
        %v581 = vpop.f32.mrb[0].mxu0
        %v582 = vpop.f32.mrb[0].mxu0
        %v583 = vpop.f32.mrb[0].mxu0
        %584 = vdwg.mxu0
        %v585 = vmax.f32 %v556, 0.0
        %v586 = vmax.f32 %v559, 0.0
        %v587 = vmax.f32 %v564, 0.0
        %v588 = vmax.f32 %v567, 0.0
        %v589 = vmax.f32 %v572, 0.0
        %v590 = vmax.f32 %v575, 0.0
        %v591 = vmax.f32 %v580, 0.0
        %v592 = vpack.c.bf16 %v586, %v585
        %v593 = vpack.c.bf16 %v588, %v587
        %v594 = vpack.c.bf16 %v590, %v589
        %v595 = vpack.c.bf16 %v591, %v591
        %v596 = vld [vmem:[%s5] sm:$0xf]
        %v597 = vld [vmem:[%s5 + $0x4] sm:$0xf]
        %v598 = vld [vmem:[%s5 + $0x8] sm:$0xf]
        %v599 = vld [vmem:[%s5 + $0xc] sm:$0xf]
        %v600 = vld [vmem:[%s6] sm:$0x1]
        %v602 = vlaneseq
        %v603 = vshrl.u32 %v602, 7
        %v604 = vsub.s32 0, %v603
        %v605 = vrot.slane %v600, %v604
        %v611 = vunpack.c.l.b16 %v596
        %v612 = vunpack.c.l.b16 %v597
        %v613 = vunpack.c.l.b16 %v598
        %v614 = vunpack.c.l.b16 %v599
        %v615 = vpack.c.b16 %v612, %v611
        %v616 = vpack.c.b16 %v614, %v613
        %vm619 = vcmask 261120
        %v621 = vsel %vm619, %v592, 0
        %v624 = vsel %vm619, %v593, 0
        %v627 = vsel %vm619, %v594, 0
        %v630 = vsel %vm619, %v595, 0
        %632 = vmatprep.subr.bf16.mxu0 0
        %633 = vmatpush1.bf16.msra.mxu0 %v615
        %634 = vmatprep.subr.bf16.mxu0 0
        %635 = vmatpush1.bf16.msra.mxu0 %v616
        %636 = vmatprep.subr.bf16.mxu0 0
        %637 = vmatpush1.bf16.msra.mxu0 0
        %638 = vmatprep.subr.bf16.mxu0 0
        %639 = vmatpush1.bf16.msra.mxu0 0
        %640 = vmatprep.subr.bf16.mxu0 0
        %641 = vmatpush1.bf16.msra.mxu0 0
        %642 = vmatprep.subr.bf16.mxu0 0
        %643 = vmatpush1.bf16.msra.mxu0 0
        %644 = vmatprep.subr.bf16.mxu0 0
        %645 = vmatpush1.bf16.msra.mxu0 0
        %646 = vmatprep.subr.bf16.mxu0 0
        %647 = vmatpush1.bf16.msra.mxu0 0
        %648 = vmatprep.subr.bf16.mxu0 0
        %649 = vmatpush1.bf16.msra.mxu0 0
        %650 = vmatprep.subr.bf16.mxu0 0
        %651 = vmatpush1.bf16.msra.mxu0 0
        %652 = vmatprep.subr.bf16.mxu0 0
        %653 = vmatpush1.bf16.msra.mxu0 0
        %654 = vmatprep.subr.bf16.mxu0 0
        %655 = vmatpush1.bf16.msra.mxu0 0
        %656 = vmatprep.subr.bf16.mxu0 0
        %657 = vmatpush1.bf16.msra.mxu0 0
        %658 = vmatprep.subr.bf16.mxu0 0
        %659 = vmatpush1.bf16.msra.mxu0 0
        %660 = vmatprep.subr.bf16.mxu0 0
        %661 = vmatpush1.bf16.msra.mxu0 0
        %662 = vmatprep.subr.bf16.mxu0 0
        %663 = vmatpush1.bf16.msra.mxu0 0
        %664 = vmatprep.mubr.bf16.mxu0 0
        %665 = vmatmul.mubr.bf16.gmra.mrb[0].mxu0 %v621
        %v666 = vpop.f32.mrb[0].mxu0
        %v667 = vadd.f32 %v605, %v666
        %v668 = vpop.f32.mrb[0].mxu0
        %v669 = vpop.f32.mrb[0].mxu0
        %v670 = vadd.f32 %v605, %v669
        %v671 = vpop.f32.mrb[0].mxu0
        %672 = vmatprep.mubr.bf16.mxu0 0
        %673 = vmatmul.mubr.bf16.gmra.mrb[0].mxu0 %v624
        %v674 = vpop.f32.mrb[0].mxu0
        %v675 = vadd.f32 %v605, %v674
        %v676 = vpop.f32.mrb[0].mxu0
        %v677 = vpop.f32.mrb[0].mxu0
        %v678 = vadd.f32 %v605, %v677
        %v679 = vpop.f32.mrb[0].mxu0
        %680 = vmatprep.mubr.bf16.mxu0 0
        %681 = vmatmul.mubr.bf16.gmra.mrb[0].mxu0 %v627
        %v682 = vpop.f32.mrb[0].mxu0
        %v683 = vadd.f32 %v605, %v682
        %v684 = vpop.f32.mrb[0].mxu0
        %v685 = vpop.f32.mrb[0].mxu0
        %v686 = vadd.f32 %v605, %v685
        %v687 = vpop.f32.mrb[0].mxu0
        %688 = vmatprep.mubr.bf16.mxu0 0
        %689 = vmatmul.mubr.bf16.gmra.mrb[0].mxu0 %v630
        %v690 = vpop.f32.mrb[0].mxu0
        %v691 = vadd.f32 %v605, %v690
        %v692 = vpop.f32.mrb[0].mxu0
        %v693 = vpop.f32.mrb[0].mxu0
        %v694 = vpop.f32.mrb[0].mxu0
        %695 = vdwg.mxu0
        %v696 = vmax.f32 %v667, 0.0
        %v697 = vmax.f32 %v670, 0.0
        %v698 = vmax.f32 %v675, 0.0
        %v699 = vmax.f32 %v678, 0.0
        %v700 = vmax.f32 %v683, 0.0
        %v701 = vmax.f32 %v686, 0.0
        %v702 = vmax.f32 %v691, 0.0
        %v703 = vpack.c.bf16 %v697, %v696
        %v704 = vpack.c.bf16 %v699, %v698
        %v705 = vpack.c.bf16 %v701, %v700
        %v706 = vpack.c.bf16 %v702, %v702
        %v707 = vld [vmem:[%s7] sm:$0xf]
        %v708 = vld [vmem:[%s7 + $0x4] sm:$0xf]
        %v709 = vld [vmem:[%s8] sm:$0x1]
        %v711 = vlaneseq
        %v712 = vshrl.u32 %v711, 7
        %v713 = vsub.s32 0, %v712
        %v714 = vrot.slane %v709, %v713
        %v718 = vunpack.c.l.b16 %v707
        %v719 = vunpack.c.l.b16 %v708
        %v720 = vpack.c.b16 %v719, %v718
        %vm722 = vcmask 130048
        %v724 = vsel %vm722, %v703, 0
        %v727 = vsel %vm722, %v704, 0
        %v730 = vsel %vm722, %v705, 0
        %v733 = vsel %vm722, %v706, 0
        %735 = vmatprep.subr.bf16.mxu0 0
        %736 = vmatpush1.bf16.msra.mxu0 %v720
        %737 = vmatprep.subr.bf16.mxu0 0
        %738 = vmatpush1.bf16.msra.mxu0 0
        %739 = vmatprep.subr.bf16.mxu0 0
        %740 = vmatpush1.bf16.msra.mxu0 0
        %741 = vmatprep.subr.bf16.mxu0 0
        %742 = vmatpush1.bf16.msra.mxu0 0
        %743 = vmatprep.subr.bf16.mxu0 0
        %744 = vmatpush1.bf16.msra.mxu0 0
        %745 = vmatprep.subr.bf16.mxu0 0
        %746 = vmatpush1.bf16.msra.mxu0 0
        %747 = vmatprep.subr.bf16.mxu0 0
        %748 = vmatpush1.bf16.msra.mxu0 0
        %749 = vmatprep.subr.bf16.mxu0 0
        %750 = vmatpush1.bf16.msra.mxu0 0
        %751 = vmatprep.subr.bf16.mxu0 0
        %752 = vmatpush1.bf16.msra.mxu0 0
        %753 = vmatprep.subr.bf16.mxu0 0
        %754 = vmatpush1.bf16.msra.mxu0 0
        %755 = vmatprep.subr.bf16.mxu0 0
        %756 = vmatpush1.bf16.msra.mxu0 0
        %757 = vmatprep.subr.bf16.mxu0 0
        %758 = vmatpush1.bf16.msra.mxu0 0
        %759 = vmatprep.subr.bf16.mxu0 0
        %760 = vmatpush1.bf16.msra.mxu0 0
        %761 = vmatprep.subr.bf16.mxu0 0
        %762 = vmatpush1.bf16.msra.mxu0 0
        %763 = vmatprep.subr.bf16.mxu0 0
        %764 = vmatpush1.bf16.msra.mxu0 0
        %765 = vmatprep.subr.bf16.mxu0 0
        %766 = vmatpush1.bf16.msra.mxu0 0
        %767 = vmatprep.mubr.bf16.mxu0 0
        %768 = vmatmul.mubr.bf16.gmra.mrb[0].mxu0 %v724
        %v769 = vpop.f32.mrb[0].mxu0
        %v770 = vadd.f32 %v714, %v769
        %v771 = vpop.f32.mrb[0].mxu0
        %v772 = vpop.f32.mrb[0].mxu0
        %v773 = vadd.f32 %v714, %v772
        %v774 = vpop.f32.mrb[0].mxu0
        %775 = vmatprep.mubr.bf16.mxu0 0
        %776 = vmatmul.mubr.bf16.gmra.mrb[0].mxu0 %v727
        %v777 = vpop.f32.mrb[0].mxu0
        %v778 = vadd.f32 %v714, %v777
        %v779 = vpop.f32.mrb[0].mxu0
        %v780 = vpop.f32.mrb[0].mxu0
        %v781 = vadd.f32 %v714, %v780
        %v782 = vpop.f32.mrb[0].mxu0
        %783 = vmatprep.mubr.bf16.mxu0 0
        %784 = vmatmul.mubr.bf16.gmra.mrb[0].mxu0 %v730
        %v785 = vpop.f32.mrb[0].mxu0
        %v786 = vadd.f32 %v714, %v785
        %v787 = vpop.f32.mrb[0].mxu0
        %v788 = vpop.f32.mrb[0].mxu0
        %v789 = vadd.f32 %v714, %v788
        %v790 = vpop.f32.mrb[0].mxu0
        %791 = vmatprep.mubr.bf16.mxu0 0
        %792 = vmatmul.mubr.bf16.gmra.mrb[0].mxu0 %v733
        %v793 = vpop.f32.mrb[0].mxu0
        %v794 = vadd.f32 %v714, %v793
        %v795 = vpop.f32.mrb[0].mxu0
        %v796 = vpop.f32.mrb[0].mxu0
        %v797 = vpop.f32.mrb[0].mxu0
        %798 = vdwg.mxu0
        %vm799 = vcmask 23552
        %800 = vst.msk [vmem:[%s334] sm:$0xff] %vm799, %v770
        %801 = vst.msk [vmem:[%s334 + $0x8] sm:$0xff] %vm799, %v773
        %802 = vst.msk [vmem:[%s334 + $0x10] sm:$0xff] %vm799, %v778
        %803 = vst.msk [vmem:[%s334 + $0x18] sm:$0xff] %vm799, %v781
        %804 = vst.msk [vmem:[%s334 + $0x20] sm:$0xff] %vm799, %v786
        %805 = vst.msk [vmem:[%s334 + $0x28] sm:$0xff] %vm799, %v789
        %806 = vst.msk [vmem:[%s334 + $0x30] sm:$0xff] %vm799, %v794
        %s807 = sand.u32 %s222, 1
        %s808 = sand.u32 %s222, 1
        %s809 = smul.addr %s808, 56
        %s810 = scalar_lea.vmem [#allocation2], %s809
        // Predicated region
        $region57: #{tpu_custom_call.1} parent=55 // pred_check
          %p811 = pneg %p232
        $region58: #{tpu_custom_call.1} parent=55 // pred_check_branch
          %813 = sbr.rel (%p811) target = $region60
        $region59: #{tpu_custom_call.1} parent=55 // pred_region
          %s814 = smul.u32 7, %s20
          %s815 = ssub.s32 26, %s814
          %p816 = scmp.lt.s32.totalorder %s815, 7
          %s817 = scalar_select %p816, %s815, 7
          %s818 = smul.u32 128, %s817
          %p819 = scmp.ne.s32.totalorder 0, %s818
          %s820 = smul.addr %s814, 8
          %s821 = scalar_lea.vmem %s9, %s820
          // Predicated region
          $region61: #{tpu_custom_call.1} parent=59 // pred_check
            %p822 = pneg %p819
          $region62: #{tpu_custom_call.1} parent=59 // pred_check_branch
            %824 = sbr.rel (%p822) target = $region64
          $region63: #{tpu_custom_call.1} parent=59 // pred_region
            // Predicated region
            $region65: #{tpu_custom_call.1} parent=63 // pred_check
              _
            $region66: #{tpu_custom_call.1} parent=63 // pred_check_branch
              %826 = sbr.rel (0) target = $region68
            $region67: #{tpu_custom_call.1} parent=63 // pred_region
              // Predicated region
              $region87: #{tpu_custom_call.1} parent=67 // pred_check
                _
              $region88: #{tpu_custom_call.1} parent=67 // pred_check_branch
                %888 = sbr.rel (0) target = $region90
              $region89: #{tpu_custom_call.1} parent=67 // pred_region
                %s889 = sdiv.u32.pop %s817, 7
                %s890 = srem.u32.pop %s817, 7
                // While loop
                $region91: #{tpu_custom_call.1} parent=89 // loop_pre_header
                  _
                $region92: #{tpu_custom_call.1} parent=89 // loop_header
                  %s892 = sphi 0, %s894
                  %p893 = scmp.ge.s32.totalorder %s892, %s889
                  %s897 = sphi 0, %s916
                  %s898 = sphi %s810, %s919
                  %s899 = sphi %s821, %s920
                $region93: #{tpu_custom_call.1} parent=89 // loop_header_branch
                  %896 = sbr.rel (%p893) target = $region97
                $region94: #{tpu_custom_call.1} parent=89 // loop_body
                  %v900 = vld [vmem:[%s898] sm:$0xff]
                  %901 = vst [vmem:[%s899] sm:$0xff] %v900
                  %v902 = vld [vmem:[%s898 + $0x8] sm:$0xff]
                  %903 = vst [vmem:[%s899 + $0x8] sm:$0xff] %v902
                  %v904 = vld [vmem:[%s898 + $0x10] sm:$0xff]
                  %905 = vst [vmem:[%s899 + $0x10] sm:$0xff] %v904
                  %v906 = vld [vmem:[%s898 + $0x18] sm:$0xff]
                  %907 = vst [vmem:[%s899 + $0x18] sm:$0xff] %v906
                  %v908 = vld [vmem:[%s898 + $0x20] sm:$0xff]
                  %909 = vst [vmem:[%s899 + $0x20] sm:$0xff] %v908
                  %v910 = vld [vmem:[%s898 + $0x28] sm:$0xff]
                  %911 = vst [vmem:[%s899 + $0x28] sm:$0xff] %v910
                  %v912 = vld [vmem:[%s898 + $0x30] sm:$0xff]
                  %913 = vst [vmem:[%s899 + $0x30] sm:$0xff] %v912
                  %s914 = sadd.s32 1, %s897
                  %p915 = scmp.ge.s32.totalorder %s914, %s889
                  %s916 = scalar_select %p915, 0, %s914
                  %s917 = smul.u32 %s916, 56
                  %s918 = smul.u32 %s916, 56
                  %s919 = scalar_lea.vmem %s810, %s917 [#allocation2]
                  %s920 = scalar_lea.vmem %s821, %s918
                $region95: #{tpu_custom_call.1} parent=89 // loop_footer
                  %s894 = sadd.s32 %s892, 1
                $region96: #{tpu_custom_call.1} parent=89 // loop_footer_branch
                  %891 = sbr.rel target = $region92
                $region97: #{tpu_custom_call.1} parent=89 // loop_exit
                  _
                %s921 = sdiv.u32.pop %s817, 7
                %s922 = srem.u32.pop %s817, 7
                %s923 = smul.u32 %s921, 7
                %s924 = smul.u32 8, %s923
                %s925 = scalar_lea.vmem %s810, %s924 [#allocation2]
                %s926 = smul.u32 8, %s923
                %s927 = scalar_lea.vmem %s821, %s926
                // While loop
                $region98: #{tpu_custom_call.1} parent=89 // loop_pre_header
                  _
                $region99: #{tpu_custom_call.1} parent=89 // loop_header
                  %s929 = sphi 0, %s931
                  %p930 = scmp.ge.s32.totalorder %s929, %s922
                  %s934 = sphi 0, %s941
                  %s935 = sphi %s925, %s944
                  %s936 = sphi %s927, %s945
                $region100: #{tpu_custom_call.1} parent=89 // loop_header_branch
                  %933 = sbr.rel (%p930) target = $region104
                $region101: #{tpu_custom_call.1} parent=89 // loop_body
                  %v937 = vld [vmem:[%s935] sm:$0xff]
                  %938 = vst [vmem:[%s936] sm:$0xff] %v937
                  %s939 = sadd.s32 1, %s934
                  %p940 = scmp.ge.s32.totalorder %s939, %s922
                  %s941 = scalar_select %p940, 0, %s939
                  %s942 = smul.u32 %s941, 8
                  %s943 = smul.u32 %s941, 8
                  %s944 = scalar_lea.vmem %s925, %s942 [#allocation2]
                  %s945 = scalar_lea.vmem %s927, %s943
                $region102: #{tpu_custom_call.1} parent=89 // loop_footer
                  %s931 = sadd.s32 %s929, 1
                $region103: #{tpu_custom_call.1} parent=89 // loop_footer_branch
                  %928 = sbr.rel target = $region99
                $region104: #{tpu_custom_call.1} parent=89 // loop_exit
                  _
              $region90: #{tpu_custom_call.1} parent=67 // pred_fallthru
                _
              // Predicated region
              $region105: #{tpu_custom_call.1} parent=67 // pred_check
                _
              $region106: #{tpu_custom_call.1} parent=67 // pred_check_branch
                %947 = sbr.rel target = $region108
              $region107: #{tpu_custom_call.1} parent=67 // pred_region
                _
              $region108: #{tpu_custom_call.1} parent=67 // pred_fallthru
                _
            $region68: #{tpu_custom_call.1} parent=63 // pred_fallthru
              _
            // Predicated region
            $region69: #{tpu_custom_call.1} parent=63 // pred_check
              _
            $region70: #{tpu_custom_call.1} parent=63 // pred_check_branch
              %828 = sbr.rel target = $region72
            $region71: #{tpu_custom_call.1} parent=63 // pred_region
              %s830 = sdiv.u32.pop %s817, 7
              %s831 = srem.u32.pop %s817, 7
              // While loop
              $region73: #{tpu_custom_call.1} parent=71 // loop_pre_header
                _
              $region74: #{tpu_custom_call.1} parent=71 // loop_header
                %s833 = sphi 0, %s835
                %p834 = scmp.ge.s32.totalorder %s833, %s830
                %s838 = sphi 0, %s857
                %s839 = sphi %s810, %s860
                %s840 = sphi %s821, %s861
              $region75: #{tpu_custom_call.1} parent=71 // loop_header_branch
                %837 = sbr.rel (%p834) target = $region79
              $region76: #{tpu_custom_call.1} parent=71 // loop_body
                %v841 = vld [vmem:[%s839] sm:$0xff]
                %842 = vst [vmem:[%s840] sm:$0xff] %v841
                %v843 = vld [vmem:[%s839 + $0x8] sm:$0xff]
                %844 = vst [vmem:[%s840 + $0x8] sm:$0xff] %v843
                %v845 = vld [vmem:[%s839 + $0x10] sm:$0xff]
                %846 = vst [vmem:[%s840 + $0x10] sm:$0xff] %v845
                %v847 = vld [vmem:[%s839 + $0x18] sm:$0xff]
                %848 = vst [vmem:[%s840 + $0x18] sm:$0xff] %v847
                %v849 = vld [vmem:[%s839 + $0x20] sm:$0xff]
                %850 = vst [vmem:[%s840 + $0x20] sm:$0xff] %v849
                %v851 = vld [vmem:[%s839 + $0x28] sm:$0xff]
                %852 = vst [vmem:[%s840 + $0x28] sm:$0xff] %v851
                %v853 = vld [vmem:[%s839 + $0x30] sm:$0xff]
                %854 = vst [vmem:[%s840 + $0x30] sm:$0xff] %v853
                %s855 = sadd.s32 1, %s838
                %p856 = scmp.ge.s32.totalorder %s855, %s830
                %s857 = scalar_select %p856, 0, %s855
                %s858 = smul.u32 %s857, 56
                %s859 = smul.u32 %s857, 56
                %s860 = scalar_lea.vmem %s810, %s858 [#allocation2]
                %s861 = scalar_lea.vmem %s821, %s859
              $region77: #{tpu_custom_call.1} parent=71 // loop_footer
                %s835 = sadd.s32 %s833, 1
              $region78: #{tpu_custom_call.1} parent=71 // loop_footer_branch
                %832 = sbr.rel target = $region74
              $region79: #{tpu_custom_call.1} parent=71 // loop_exit
                _
              %s862 = sdiv.u32.pop %s817, 7
              %s863 = srem.u32.pop %s817, 7
              %s864 = smul.u32 %s862, 7
              %s865 = smul.u32 8, %s864
              %s866 = scalar_lea.vmem %s810, %s865 [#allocation2]
              %s867 = smul.u32 8, %s864
              %s868 = scalar_lea.vmem %s821, %s867
              // While loop
              $region80: #{tpu_custom_call.1} parent=71 // loop_pre_header
                _
              $region81: #{tpu_custom_call.1} parent=71 // loop_header
                %s870 = sphi 0, %s872
                %p871 = scmp.ge.s32.totalorder %s870, %s863
                %s875 = sphi 0, %s882
                %s876 = sphi %s866, %s885
                %s877 = sphi %s868, %s886
              $region82: #{tpu_custom_call.1} parent=71 // loop_header_branch
                %874 = sbr.rel (%p871) target = $region86
              $region83: #{tpu_custom_call.1} parent=71 // loop_body
                %v878 = vld [vmem:[%s876] sm:$0xff]
                %879 = vst [vmem:[%s877] sm:$0xff] %v878
                %s880 = sadd.s32 1, %s875
                %p881 = scmp.ge.s32.totalorder %s880, %s863
                %s882 = scalar_select %p881, 0, %s880
                %s883 = smul.u32 %s882, 8
                %s884 = smul.u32 %s882, 8
                %s885 = scalar_lea.vmem %s866, %s883 [#allocation2]
                %s886 = scalar_lea.vmem %s868, %s884
              $region84: #{tpu_custom_call.1} parent=71 // loop_footer
                %s872 = sadd.s32 %s870, 1
              $region85: #{tpu_custom_call.1} parent=71 // loop_footer_branch
                %869 = sbr.rel target = $region81
              $region86: #{tpu_custom_call.1} parent=71 // loop_exit
                _
            $region72: #{tpu_custom_call.1} parent=63 // pred_fallthru
              _
          $region64: #{tpu_custom_call.1} parent=59 // pred_fallthru
            _
          %948 = vnop
        $region60: #{tpu_custom_call.1} parent=55 // pred_fallthru
          _
      $region56: #{tpu_custom_call.1} parent=5 // pred_fallthru
        _
      %p949 = scmp.le.s32.totalorder 2, %s15
      // Predicated region
      $region109: #{tpu_custom_call.1} parent=5 // pred_check
        %p950 = pneg %p949
      $region110: #{tpu_custom_call.1} parent=5 // pred_check_branch
        %952 = sbr.rel (%p950) target = $region112
      $region111: #{tpu_custom_call.1} parent=5 // pred_region
        %s953 = ssub.s32 %s15, 2
        // Predicated region
        $region113: #{tpu_custom_call.1} parent=111 // pred_check
          %p954 = pneg %p238
        $region114: #{tpu_custom_call.1} parent=111 // pred_check_branch
          %956 = sbr.rel (%p954) target = $region116
        $region115: #{tpu_custom_call.1} parent=111 // pred_region
          %s957 = sand.u32 %s223, 1
          %s958 = sand.u32 %s223, 1
          %s959 = smul.addr %s958, 56
          %s960 = scalar_lea.vmem [#allocation2], %s959
        $region116: #{tpu_custom_call.1} parent=111 // pred_fallthru
          _
      $region112: #{tpu_custom_call.1} parent=5 // pred_fallthru
        _
    $region6: #{tpu_custom_call.1} parent=1 // loop_footer
      %s19 = sadd.s32 1, %s15
    $region7: #{tpu_custom_call.1} parent=1 // loop_footer_branch
      %14 = sbr.rel target = $region3
    $region8: #{tpu_custom_call.1} parent=1 // loop_exit
      _

</llo_original>
